<compile_context>
chip_gen: v7x
topology: tpu7x:2x2x1
jax: 0.10.0
libtpu: 0.0.40
codegen_flags: <defaults>
</compile_context>

<pallas_src>
import numpy as np
import jax
import jax.numpy as jnp
from jax import lax
from jax.experimental import pallas as pl
from jax.experimental.pallas import tpu as pltpu


# ----------------------------------------------------------------------------
# Pallas kernel: one V_high tile of "gather + neighbor-sum" against the already
# fc-transformed activations, plus the bias add.
# ----------------------------------------------------------------------------
def _ico_upsample_kernel(z_ref, nbt_ref, b_ref, o_ref):
    # z_ref  : (M, V_low) f32 VMEM  -- M = N*C_out rows of (W/NB) @ x, resident
    # nbt_ref: (NB, TV)   i32 VMEM  -- neighbor indices for this V_high tile
    # b_ref  : (M, 1)     f32 VMEM  -- bias replicated per sample row, resident
    # o_ref  : (M, TV)    f32 VMEM
    nb, tv = nbt_ref.shape
    v_low = z_ref.shape[1]

    # One-hot "gather + sum" matrix for this tile:
    #   g[u, t] = #{j : neigh[t, j] == u}
    # Accumulate as int32 (compares/adds stay on the integer VPU path), convert
    # to f32 once; the 1/NB mean scale is already folded into z's weights.
    src = lax.broadcasted_iota(jnp.int32, (v_low, tv), 0)      # built once per tile
    counts = jnp.zeros((v_low, tv), jnp.int32)
    for j in range(nb):                       # NB is tiny & static -> unrolled
        row = nbt_ref[pl.ds(j, 1), :]         # (1, TV) i32, lane-aligned
        counts = counts + (src == row).astype(jnp.int32)
    gmat = counts.astype(jnp.float32)

    # Single per-tile MXU matmul (M = N*C_out rows), lane-dense output + bias.
    out = jnp.dot(z_ref[...], gmat, preferred_element_type=jnp.float32)
    o_ref[...] = (out + b_ref[...]).astype(o_ref.dtype)


def _vmem_limit_bytes(m_rows, v_low, nb, tile_v):
    """Shape-derived VMEM budget, floored at 32 MiB (v5e scoped default is only
    16 MiB) and capped at 56 MiB so it stays inside v7x's 64 MiB physical VMEM."""
    f32 = 4
    resident = m_rows * v_low * f32 + m_rows * f32            # z slab + bias
    streamed = 2 * nb * tile_v * 4 + 2 * m_rows * tile_v * f32  # dbl-buffered tiles
    temps = 2 * v_low * tile_v * f32                          # iota + counts/gmat
    est = 2 * (resident + streamed + temps)                   # regalloc headroom
    return int(min(max(est, 32 * 1024 * 1024), 56 * 1024 * 1024))


def ico_upsample_pallas(x, up_neigh_indices, weight, bias, *, tile_v=256):
    """x: (N, C_in, V_low) f32; up_neigh_indices: (V_high, NB) int;
    weight: (C_out, C_in); bias: (C_out,).  Returns (N, C_out, V_high) f32."""
    n_samples, c_in, v_low = x.shape
    v_high, nb = up_neigh_indices.shape
    c_out = weight.shape[0]
    m_rows = n_samples * c_out

    # ---- algebraic hoists (fc + mean scale applied BEFORE the gather) -------
    # z[n, o, v] = sum_c (W[o, c] / NB) * x[n, c, v]; tiny matmul, done once.
    # Highest precision keeps f32 accuracy for this small contraction.
    w_scaled = (weight / float(nb)).astype(jnp.float32)
    z = jnp.einsum("oc,ncv->nov", w_scaled, x.astype(jnp.float32),
                   precision=lax.Precision.HIGHEST)
    z2d = z.reshape(m_rows, v_low)                             # free (contiguous)
    bias_col = jnp.tile(bias.astype(jnp.float32), (n_samples,)).reshape(m_rows, 1)

    # Pad V_high to a tile multiple so every output store is a full, unmasked
    # lane-dense tile; pad columns alias vertex 0 (valid) and are sliced off.
    v_pad = int(pl.cdiv(v_high, tile_v)) * tile_v
    neigh_t = jnp.zeros((nb, v_pad), jnp.int32).at[:, :v_high].set(
        jnp.asarray(up_neigh_indices, jnp.int32).T)

    grid = (v_pad // tile_v,)
    y2d = pl.pallas_call(
        _ico_upsample_kernel,
        out_shape=jax.ShapeDtypeStruct((m_rows, v_pad), jnp.float32),
        grid_spec=pltpu.PrefetchScalarGridSpec(
            num_scalar_prefetch=0,
            grid=grid,
            in_specs=[
                # fc-transformed activations: block index constant across the
                # tile axis -> VMEM-resident, never re-DMA'd.
                pl.BlockSpec((m_rows, v_low), lambda j: (0, 0)),
                # neighbor-index tile (streamed / software-pipelined).
                pl.BlockSpec((nb, tile_v), lambda j: (0, j)),
                # bias column (tiny, resident).
                pl.BlockSpec((m_rows, 1), lambda j: (0, 0)),
            ],
            out_specs=pl.BlockSpec((m_rows, tile_v), lambda j: (0, j)),
        ),
        compiler_params=pltpu.CompilerParams(
            # Tile axis is fully independent -> shard across v7x's two TCs.
            dimension_semantics=("parallel",),
            vmem_limit_bytes=_vmem_limit_bytes(m_rows, v_low, nb, tile_v),
        ),
    )(z2d, neigh_t, bias_col)

    # (N*C_out, V_pad) -> (N, C_out, V_high); reshape is free, slice drops pad.
    return y2d.reshape(n_samples, c_out, v_pad)[:, :, :v_high]


# ----------------------------------------------------------------------------
# Module wrapper (parameter setup in plain JAX / numpy)
# ----------------------------------------------------------------------------
class IcoUpSamplePallas:
    """JAX/Pallas port of surfify.nn.IcoUpSample (interp upsampling + fc)."""

    def __init__(self, in_feats, out_feats, up_neigh_indices, key):
        self.in_feats = in_feats
        self.out_feats = out_feats
        self.up_neigh_indices = np.asarray(up_neigh_indices)
        self.n_vertices, self.neigh_size = self.up_neigh_indices.shape
        # Deterministic nn.Linear-style init: weight (out, in), bias (out,).
        kw, kb = jax.random.split(key)
        bound = 1.0 / float(np.sqrt(in_feats))
        self.weight = jax.random.uniform(
            kw, (out_feats, in_feats), jnp.float32, -bound, bound)
        self.bias = jax.random.uniform(
            kb, (out_feats,), jnp.float32, -bound, bound)

    def __call__(self, x):
        n_samples, c_in, v_low = x.shape
        assert c_in == self.in_feats
        # Same consistency check as the torch module.
        assert self.n_vertices == v_low * 4 - 6
        return ico_upsample_pallas(
            x, self.up_neigh_indices, self.weight, self.bias)


# ----------------------------------------------------------------------------
# Pure-numpy reference replicating the PyTorch forward literally.
# ----------------------------------------------------------------------------
def reference_numpy(x, up_neigh_indices, weight, bias):
    x = np.asarray(x, dtype=np.float32)
    up_neigh = np.asarray(up_neigh_indices)
    weight = np.asarray(weight)
    bias = np.asarray(bias)
    n_samples, c_in, v_low = x.shape
    v_high, nb = up_neigh.shape

    g = x[:, :, up_neigh.reshape(-1)].reshape(n_samples, c_in, v_high, nb)
    interp = g.mean(axis=-1)                                  # (N, C_in, V_high)
    z = interp.transpose(0, 2, 1).reshape(n_samples * v_high, c_in)
    z = z @ weight.T + bias
    y = z.reshape(n_samples, v_high, -1).transpose(0, 2, 1)   # (N, C_out, V_high)
    return y.astype(np.float32)


if __name__ == "__main__":
    key = jax.random.PRNGKey(0)
    k_x, k_neigh, k_param = jax.random.split(key, 3)

    # Small icosahedron-consistent shapes: order-2 -> order-3 sphere.
    N, C_IN, C_OUT = 2, 8, 4
    V_LOW, NB = 162, 7
    V_HIGH = 4 * V_LOW - 6          # 642, matches the module's assert

    up_neigh = np.asarray(
        jax.random.randint(k_neigh, (V_HIGH, NB), 0, V_LOW, dtype=jnp.int32))
    x = jax.random.normal(k_x, (N, C_IN, V_LOW), dtype=jnp.float32)

    module = IcoUpSamplePallas(C_IN, C_OUT, up_neigh, k_param)
    y = module(x)
    y = jax.block_until_ready(y)

    y_ref = reference_numpy(x, up_neigh, module.weight, module.bias)
    assert y.shape == (N, C_OUT, V_HIGH) and y.dtype == jnp.float32
    np.testing.assert_allclose(np.asarray(y), y_ref, rtol=1e-4, atol=1e-4)
    print("KERNEL_OK")
</pallas_src>

<mosaic_0001>
module attributes {stable_mosaic.version = 11 : i64} {
  func.func @_ico_upsample_kernel(%arg0: i32, %arg1: memref<8x162xf32, #tpu.memory_space<vmem>>, %arg2: memref<7x256xi32, #tpu.memory_space<vmem>>, %arg3: memref<8x1xf32, #tpu.memory_space<vmem>>, %arg4: memref<8x256xf32, #tpu.memory_space<vmem>>) attributes {dimension_semantics = [#tpu.dimension_semantics<parallel>], iteration_bounds = array<i64: 3>, scalar_prefetch = 0 : i64, scratch_operands = 0 : i64, tpu.core_type = #tpu.core_type<tc>, window_params = [{pipeline_mode = #tpu.pipeline_mode<synchronous>, transform_indices = @transform_0, window_bounds = array<i64: 8, 162>}, {transform_indices = @transform_1, window_bounds = array<i64: 7, 256>}, {pipeline_mode = #tpu.pipeline_mode<synchronous>, transform_indices = @transform_2, window_bounds = array<i64: 8, 1>}, {transform_indices = @transform_3, window_bounds = array<i64: 8, 256>}]} {
    %0 = tpu.iota {dimensions = array<i32: 0>} : vector<162x256xi32>
    %c0_i32 = arith.constant 0 : i32
    %1 = vector.broadcast %c0_i32 : i32 to vector<162x256xi32>
    %c0 = arith.constant 0 : index
    %c0_0 = arith.constant 0 : index
    %2 = vector.load %arg2[%c0, %c0_0] : memref<7x256xi32, #tpu.memory_space<vmem>>, vector<1x256xi32>
    %3 = vector.broadcast %2 : vector<1x256xi32> to vector<162x256xi32>
    %4 = arith.cmpi eq, %0, %3 : vector<162x256xi32>
    %5 = arith.extui %4 : vector<162x256xi1> to vector<162x256xi32>
    %6 = arith.addi %1, %5 : vector<162x256xi32>
    %c1 = arith.constant 1 : index
    %c0_1 = arith.constant 0 : index
    %7 = vector.load %arg2[%c1, %c0_1] : memref<7x256xi32, #tpu.memory_space<vmem>>, vector<1x256xi32>
    %8 = vector.broadcast %7 : vector<1x256xi32> to vector<162x256xi32>
    %9 = arith.cmpi eq, %0, %8 : vector<162x256xi32>
    %10 = arith.extui %9 : vector<162x256xi1> to vector<162x256xi32>
    %11 = arith.addi %6, %10 : vector<162x256xi32>
    %c2 = arith.constant 2 : index
    %c0_2 = arith.constant 0 : index
    %12 = vector.load %arg2[%c2, %c0_2] : memref<7x256xi32, #tpu.memory_space<vmem>>, vector<1x256xi32>
    %13 = vector.broadcast %12 : vector<1x256xi32> to vector<162x256xi32>
    %14 = arith.cmpi eq, %0, %13 : vector<162x256xi32>
    %15 = arith.extui %14 : vector<162x256xi1> to vector<162x256xi32>
    %16 = arith.addi %11, %15 : vector<162x256xi32>
    %c3 = arith.constant 3 : index
    %c0_3 = arith.constant 0 : index
    %17 = vector.load %arg2[%c3, %c0_3] : memref<7x256xi32, #tpu.memory_space<vmem>>, vector<1x256xi32>
    %18 = vector.broadcast %17 : vector<1x256xi32> to vector<162x256xi32>
    %19 = arith.cmpi eq, %0, %18 : vector<162x256xi32>
    %20 = arith.extui %19 : vector<162x256xi1> to vector<162x256xi32>
    %21 = arith.addi %16, %20 : vector<162x256xi32>
    %c4 = arith.constant 4 : index
    %c0_4 = arith.constant 0 : index
    %22 = vector.load %arg2[%c4, %c0_4] : memref<7x256xi32, #tpu.memory_space<vmem>>, vector<1x256xi32>
    %23 = vector.broadcast %22 : vector<1x256xi32> to vector<162x256xi32>
    %24 = arith.cmpi eq, %0, %23 : vector<162x256xi32>
    %25 = arith.extui %24 : vector<162x256xi1> to vector<162x256xi32>
    %26 = arith.addi %21, %25 : vector<162x256xi32>
    %c5 = arith.constant 5 : index
    %c0_5 = arith.constant 0 : index
    %27 = vector.load %arg2[%c5, %c0_5] : memref<7x256xi32, #tpu.memory_space<vmem>>, vector<1x256xi32>
    %28 = vector.broadcast %27 : vector<1x256xi32> to vector<162x256xi32>
    %29 = arith.cmpi eq, %0, %28 : vector<162x256xi32>
    %30 = arith.extui %29 : vector<162x256xi1> to vector<162x256xi32>
    %31 = arith.addi %26, %30 : vector<162x256xi32>
    %c6 = arith.constant 6 : index
    %c0_6 = arith.constant 0 : index
    %32 = vector.load %arg2[%c6, %c0_6] : memref<7x256xi32, #tpu.memory_space<vmem>>, vector<1x256xi32>
    %33 = vector.broadcast %32 : vector<1x256xi32> to vector<162x256xi32>
    %34 = arith.cmpi eq, %0, %33 : vector<162x256xi32>
    %35 = arith.extui %34 : vector<162x256xi1> to vector<162x256xi32>
    %36 = arith.addi %31, %35 : vector<162x256xi32>
    %37 = arith.sitofp %36 : vector<162x256xi32> to vector<162x256xf32>
    %c0_7 = arith.constant 0 : index
    %c0_8 = arith.constant 0 : index
    %38 = vector.load %arg1[%c0_7, %c0_8] : memref<8x162xf32, #tpu.memory_space<vmem>>, vector<8x162xf32>
    %cst = arith.constant dense<0.000000e+00> : vector<8x256xf32>
    %39 = tpu.matmul %38, %37, %cst {dimension_numbers = #tpu.dot_dimension_numbers<[1], [0], [0], [1], [0, 0, 1, 1], [], []>} : vector<8x162xf32>, vector<162x256xf32>, vector<8x256xf32> -> vector<8x256xf32>
    %c0_9 = arith.constant 0 : index
    %c0_10 = arith.constant 0 : index
    %40 = vector.load %arg3[%c0_9, %c0_10] : memref<8x1xf32, #tpu.memory_space<vmem>>, vector<8x1xf32>
    %41 = vector.broadcast %40 : vector<8x1xf32> to vector<8x256xf32>
    %42 = arith.addf %39, %41 : vector<8x256xf32>
    %c0_11 = arith.constant 0 : index
    %c0_12 = arith.constant 0 : index
    %43 = vector.load %arg4[%c0_11, %c0_12] : memref<8x256xf32, #tpu.memory_space<vmem>>, vector<8x256xf32>
    tpu.vector_store %arg4[%c0_11, %c0_12], %42 {strides = array<i32>} : memref<8x256xf32, #tpu.memory_space<vmem>>, vector<8x256xf32>,
    return
  }
  func.func @transform_0(%arg0: i32) -> (i32, i32) {
    %c0_i32 = arith.constant 0 : i32
    %c0_i32_0 = arith.constant 0 : i32
    %c0_i32_1 = arith.constant 0 : i32
    return %c0_i32, %c0_i32_0 : i32, i32
  }
  func.func @transform_1(%arg0: i32) -> (i32, i32) {
    %c0_i32 = arith.constant 0 : i32
    %c0_i32_0 = arith.constant 0 : i32
    return %c0_i32, %arg0 : i32, i32
  }
  func.func @transform_2(%arg0: i32) -> (i32, i32) {
    %c0_i32 = arith.constant 0 : i32
    %c0_i32_0 = arith.constant 0 : i32
    %c0_i32_1 = arith.constant 0 : i32
    return %c0_i32, %c0_i32_0 : i32, i32
  }
  func.func @transform_3(%arg0: i32) -> (i32, i32) {
    %c0_i32 = arith.constant 0 : i32
    %c0_i32_0 = arith.constant 0 : i32
    return %c0_i32, %arg0 : i32, i32
  }
}

</mosaic_0001>

<llo_original>
// kernel: tpu_custom_call.1
$region0: #{tpu_custom_call.1}
  #allocation0 [shape = 'u32[]', space=smem, size = 0x4, offset = 0x4, fixed_abs, tag = 'smem constant byte address 0x4 - core index']
  #allocation1 [shape = 'u32[144,128]{1,0:T(1,128)}', space=vmem, size = 0x12000, scoped, tag = 'internal scratch']
  %s0 = inlined_call_operand.hbm [shape: f32[8,162], index: 0, kind: input, shape index: {}]
  %s1 = inlined_call_operand.hbm [shape: s32[7,768], index: 1, kind: input, shape index: {}]
  %s2 = inlined_call_operand.vmem [shape: f32[8,1], index: 2, kind: input, shape index: {}]
  %s3 = inlined_call_operand.hbm [shape: f32[8,768], index: 3, kind: output, shape index: {}]
  %s4 = sld [smem:[#allocation0]]
  $region53: #{tpu_custom_call.1} parent=0
    _
  %s6 = ssub.s32 1, %s4
  %s7 = scalar_select 0, %s6, %s4
  $region1: #{tpu_custom_call.1} parent=0
    #allocation2 [shape = 'u8[8192]{0}', space=vmem, size = 0x2000, scoped, tag = 'input window, operand 0, single buffered']
    #allocation3 [shape = 's32[2]{0}', space=sflag, size = 0x8, scoped, tag = 'scoped memory for tpu_custom_call.1']
    #allocation4 [shape = 's32[2]{0}', space=sflag, size = 0x8, scoped, tag = 'scoped memory for tpu_custom_call.1']
    #allocation5 [shape = 'u8[16384]{0}', space=vmem, size = 0x4000, scoped, tag = 'input window, operand 1']
    #allocation6 [shape = 's32[2]{0}', space=sflag, size = 0x8, scoped, tag = 'scoped memory for tpu_custom_call.1']
    #allocation7 [shape = 'u8[16384]{0}', space=vmem, size = 0x4000, scoped, tag = 'output window, operand 0']
    %8 = vsyncpa [#allocation3], 0
    %9 = vsyncpa [#allocation6], 0
    %s10 = scalar_lea.sflag [#allocation6], 1
    %11 = vsyncpa %s10, 0
    %12 = vsyncpa [#allocation4], 0
    %s13 = scalar_lea.sflag [#allocation4], 1
    %14 = vsyncpa %s13, 0
    loop: start=0, step=1, limit=5
    $region2: #{tpu_custom_call.1} parent=1 // loop_pre_header
      _
    $region3: #{tpu_custom_call.1} parent=1 // loop_header
      %s16 = sphi 0, %s20
      %p17 = scmp.ge.s32.totalorder %s16, 5
      %s24 = sphi 0, %s24
      %s26 = sphi 0, %s24
      %s27 = sphi 0, %s26
      %s41 = sphi 0, %s27
      %s47 = sphi 0, %s49
      %s50 = sphi 0, %s47
      %s51 = sphi 0, %s50
      %s67 = sphi 0, %s51
      %s71 = sphi 0, %s71
      %s73 = sphi 0, %s71
      %s74 = sphi 0, %s73
      %s88 = sphi 0, %s74
      %s94 = sphi 0, %s96
      %s97 = sphi 0, %s94
      %s98 = sphi 0, %s97
      %s114 = sphi 0, %s98
    $region4: #{tpu_custom_call.1} parent=1 // loop_header_branch
      %19 = sbr.rel (%p17) target = $region8
    $region5: #{tpu_custom_call.1} parent=1 // loop_body
      %s21 = ssub.s32 %s16, 1
      %s22 = ssub.s32 %s16, 2
      %s23 = sadd.s32 %s16, 1
      %s25 = sadd.s32 %s24, 1
      %p28 = scmp.eq.s32.totalorder %s16, 2
      %p29 = scmp.ne.s32.totalorder %s24, %s26
      %p30 = scmp.eq.s32.totalorder %s16, 0
      %p31 = por %p29, %p30
      %p32 = scmp.ne.s32.totalorder %s24, %s26
      %p33 = scmp.eq.s32.totalorder %s21, 2
      %p34 = por %p32, %p33
      %p35 = scmp.ne.s32.totalorder %s26, %s27
      %p36 = scmp.eq.s32.totalorder %s21, 0
      %p37 = por %p35, %p36
      %p38 = scmp.ne.s32.totalorder %s26, %s27
      %p39 = scmp.eq.s32.totalorder %s22, 2
      %p40 = por %p38, %p39
      %p42 = scmp.ne.s32.totalorder %s27, %s41
      %p43 = scmp.eq.s32.totalorder %s22, 0
      %p44 = por %p42, %p43
      %s45 = ssub.s32 %s16, %s23
      %p46 = scmp.eq.s32.totalorder %s45, 0
      %s48 = sadd.s32 %s47, 1
      %s49 = scalar_select %p46, %s47, %s48
      %p52 = pneg %p46
      %p53 = scmp.eq.s32.totalorder %s16, 2
      %p54 = por %p52, %p53
      %p55 = scmp.ne.s32.totalorder %s47, %s50
      %p56 = scmp.eq.s32.totalorder %s16, 0
      %p57 = por %p55, %p56
      %p58 = scmp.ne.s32.totalorder %s47, %s50
      %p59 = scmp.eq.s32.totalorder %s21, 2
      %p60 = por %p58, %p59
      %p61 = scmp.ne.s32.totalorder %s50, %s51
      %p62 = scmp.eq.s32.totalorder %s21, 0
      %p63 = por %p61, %p62
      %p64 = scmp.ne.s32.totalorder %s50, %s51
      %p65 = scmp.eq.s32.totalorder %s22, 2
      %p66 = por %p64, %p65
      %p68 = scmp.ne.s32.totalorder %s51, %s67
      %p69 = scmp.eq.s32.totalorder %s22, 0
      %p70 = por %p68, %p69
      %s72 = sadd.s32 %s71, 1
      %p75 = scmp.eq.s32.totalorder %s16, 2
      %p76 = scmp.ne.s32.totalorder %s71, %s73
      %p77 = scmp.eq.s32.totalorder %s16, 0
      %p78 = por %p76, %p77
      %p79 = scmp.ne.s32.totalorder %s71, %s73
      %p80 = scmp.eq.s32.totalorder %s21, 2
      %p81 = por %p79, %p80
      %p82 = scmp.ne.s32.totalorder %s73, %s74
      %p83 = scmp.eq.s32.totalorder %s21, 0
      %p84 = por %p82, %p83
      %p85 = scmp.ne.s32.totalorder %s73, %s74
      %p86 = scmp.eq.s32.totalorder %s22, 2
      %p87 = por %p85, %p86
      %p89 = scmp.ne.s32.totalorder %s74, %s88
      %p90 = scmp.eq.s32.totalorder %s22, 0
      %p91 = por %p89, %p90
      %s92 = ssub.s32 %s16, %s23
      %p93 = scmp.eq.s32.totalorder %s92, 0
      %s95 = sadd.s32 %s94, 1
      %s96 = scalar_select %p93, %s94, %s95
      %p99 = pneg %p93
      %p100 = scmp.eq.s32.totalorder %s16, 2
      %p101 = por %p99, %p100
      %p102 = scmp.ne.s32.totalorder %s94, %s97
      %p103 = scmp.eq.s32.totalorder %s16, 0
      %p104 = por %p102, %p103
      %p105 = scmp.ne.s32.totalorder %s94, %s97
      %p106 = scmp.eq.s32.totalorder %s21, 2
      %p107 = por %p105, %p106
      %p108 = scmp.ne.s32.totalorder %s97, %s98
      %p109 = scmp.eq.s32.totalorder %s21, 0
      %p110 = por %p108, %p109
      %p111 = scmp.ne.s32.totalorder %s97, %s98
      %p112 = scmp.eq.s32.totalorder %s22, 2
      %p113 = por %p111, %p112
      %p115 = scmp.ne.s32.totalorder %s98, %s114
      %p116 = scmp.eq.s32.totalorder %s22, 0
      %p117 = por %p115, %p116
      %p118 = scmp.le.s32.totalorder 1, %s16
      %p119 = scmp.lt.s32.totalorder %s16, 4
      %p120 = pnand %p118, %p119
      %p121 = pneg %p120
      // Predicated region
      $region9: #{tpu_custom_call.1} parent=5 // pred_check
        _
      $region10: #{tpu_custom_call.1} parent=5 // pred_check_branch
        %123 = sbr.rel (%p120) target = $region12
      $region11: #{tpu_custom_call.1} parent=5 // pred_region
        %s124 = ssub.s32 %s16, 1
        // Predicated region
        $region13: #{tpu_custom_call.1} parent=11 // pred_check
          %p125 = pneg %p37
        $region14: #{tpu_custom_call.1} parent=11 // pred_check_branch
          %127 = sbr.rel (%p125) target = $region16
        $region15: #{tpu_custom_call.1} parent=11 // pred_region
          %s129 = ssub.s32 256, 256
          %130 = vsyncadd [#allocation3], %s129
          %s132 = sshll.u32 [#allocation2], 4
          %s133 = int_to_ptr.vmem [resolvable:$true] %s132
          %135 = dma.hbm_to_vmem [thread:$0]  %s0, 256, %s133, [#allocation3]
        $region16: #{tpu_custom_call.1} parent=11 // pred_fallthru
          _
        // Predicated region
        $region17: #{tpu_custom_call.1} parent=11 // pred_check
          %p136 = pneg %p84
        $region18: #{tpu_custom_call.1} parent=11 // pred_check_branch
          %138 = sbr.rel (%p136) target = $region20
        $region19: #{tpu_custom_call.1} parent=11 // pred_region
          _
        $region20: #{tpu_custom_call.1} parent=11 // pred_fallthru
          _
      $region12: #{tpu_custom_call.1} parent=5 // pred_fallthru
        _
      %p139 = scmp.lt.s32.totalorder %s16, 3
      // Predicated region
      $region21: #{tpu_custom_call.1} parent=5 // pred_check
        %p140 = pneg %p139
      $region22: #{tpu_custom_call.1} parent=5 // pred_check_branch
        %142 = sbr.rel (%p140) target = $region24
      $region23: #{tpu_custom_call.1} parent=5 // pred_region
        // Predicated region
        $region25: #{tpu_custom_call.1} parent=23 // pred_check
          %p143 = pneg %p57
        $region26: #{tpu_custom_call.1} parent=23 // pred_check_branch
          %145 = sbr.rel (%p143) target = $region28
        $region27: #{tpu_custom_call.1} parent=23 // pred_region
          %s146 = sand.u32 %s47, 1
          %s147 = scalar_lea.sflag [#allocation6], %s146
          %s148 = sand.u32 %s47, 1
          %s149 = smul.addr %s148, 16
          %s150 = scalar_lea.vmem [#allocation5], %s149
          %s151 = smul.u32 2, %s16
          %s153 = ssub.s32 256, 256
          %154 = vsyncadd %s147, %s153
          %s155 = smul.addr %s151, 128
          %s156 = scalar_lea.hbm %s1, %s155
          %s158 = sshll.u32 %s150, 4
          %s159 = int_to_ptr.vmem [resolvable:$true] %s158
          %161 = dma.hbm_to_vmem [thread:$0]  %s156, 256, %s159, %s147
        $region28: #{tpu_custom_call.1} parent=23 // pred_fallthru
          _
      $region24: #{tpu_custom_call.1} parent=5 // pred_fallthru
        _
      %p162 = scmp.le.s32.totalorder 1, %s16
      %p163 = scmp.lt.s32.totalorder %s16, 4
      %p164 = pnand %p162, %p163
      %p165 = pneg %p164
      // Predicated region
      $region29: #{tpu_custom_call.1} parent=5 // pred_check
        _
      $region30: #{tpu_custom_call.1} parent=5 // pred_check_branch
        %167 = sbr.rel (%p164) target = $region32
      $region31: #{tpu_custom_call.1} parent=5 // pred_region
        %s168 = ssub.s32 %s16, 1
        // Predicated region
        $region33: #{tpu_custom_call.1} parent=31 // pred_check
          %p169 = pneg %p37
        $region34: #{tpu_custom_call.1} parent=31 // pred_check_branch
          %171 = sbr.rel (%p169) target = $region36
        $region35: #{tpu_custom_call.1} parent=31 // pred_region
          %172 = dma.done [#allocation3], 256
        $region36: #{tpu_custom_call.1} parent=31 // pred_fallthru
          _
        %s173 = sand.u32 %s50, 1
        %s174 = scalar_lea.sflag [#allocation6], %s173
        %s175 = sand.u32 %s50, 1
        %s176 = smul.addr %s175, 16
        %s177 = scalar_lea.vmem [#allocation5], %s176
        // Predicated region
        $region37: #{tpu_custom_call.1} parent=31 // pred_check
          %p178 = pneg %p63
        $region38: #{tpu_custom_call.1} parent=31 // pred_check_branch
          %180 = sbr.rel (%p178) target = $region40
        $region39: #{tpu_custom_call.1} parent=31 // pred_region
          %181 = dma.done %s174, 256
        $region40: #{tpu_custom_call.1} parent=31 // pred_fallthru
          _
        %p182 = pneg %p37
        %p183 = pneg %p34
        %s184 = sand.u32 %s50, 1
        %s185 = scalar_lea.sflag [#allocation6], %s184
        %s186 = sand.u32 %s50, 1
        %s187 = smul.addr %s186, 16
        %s188 = scalar_lea.vmem [#allocation5], %s187
        %p189 = pneg %p63
        %p190 = pneg %p60
        %p191 = pneg %p84
        %p192 = pneg %p81
        %p193 = pneg %p110
        %p194 = pneg %p107
        %s195 = sand.u32 %s97, 1
        %s196 = scalar_lea.sflag [#allocation4], %s195
        %s197 = sand.u32 %s97, 1
        %s198 = smul.addr %s197, 16
        %s199 = scalar_lea.vmem [#allocation7], %s198
        %s200 = smul.u32 2, %s21
        %s201 = smul.u32 2, %s21
        %v202 = vlaneseq
        %v203 = vshrl.u32 %v202, 7
        %v204 = vadd.s32 %v203, 8
        %v205 = vadd.s32 %v203, 16
        %v206 = vadd.s32 %v203, 24
        %v207 = vadd.s32 %v203, 32
        %v208 = vadd.s32 %v203, 40
        %v209 = vadd.s32 %v203, 48
        %v210 = vadd.s32 %v203, 56
        %v211 = vadd.s32 %v203, 64
        %v212 = vadd.s32 %v203, 72
        %v213 = vadd.s32 %v203, 80
        %v214 = vadd.s32 %v203, 88
        %v215 = vadd.s32 %v203, 96
        %v216 = vadd.s32 %v203, 104
        %v217 = vadd.s32 %v203, 112
        %v218 = vadd.s32 %v203, 120
        %v219 = vadd.s32 %v203, 128
        %v220 = vadd.s32 %v203, 136
        %v221 = vadd.s32 %v203, 144
        %v222 = vadd.s32 %v203, 152
        %v223 = vadd.s32 %v203, 160
        %v224 = vld [vmem:[%s177] ss:$8 sm:$0x3]
        %v225 = vlaneseq
        %v226 = vshrl.u32 %v225, 7
        %v227 = vsub.s32 0, %v226
        %v228 = vrot.slane %v224, %v227
        %v229 = vlaneseq
        %v230 = vshrl.u32 %v229, 7
        %v231 = vsub.s32 1, %v230
        %v232 = vrot.slane %v224, %v231
        %vm233 = vcmp.eq.s32.totalorder %v203, %v228
        %vm234 = vcmp.eq.s32.totalorder %v203, %v232
        %vm235 = vcmp.eq.s32.totalorder %v204, %v228
        %vm236 = vcmp.eq.s32.totalorder %v204, %v232
        %vm237 = vcmp.eq.s32.totalorder %v205, %v228
        %vm238 = vcmp.eq.s32.totalorder %v205, %v232
        %vm239 = vcmp.eq.s32.totalorder %v206, %v228
        %vm240 = vcmp.eq.s32.totalorder %v206, %v232
        %vm241 = vcmp.eq.s32.totalorder %v207, %v228
        %vm242 = vcmp.eq.s32.totalorder %v207, %v232
        %vm243 = vcmp.eq.s32.totalorder %v208, %v228
        %vm244 = vcmp.eq.s32.totalorder %v208, %v232
        %vm245 = vcmp.eq.s32.totalorder %v209, %v228
        %vm246 = vcmp.eq.s32.totalorder %v209, %v232
        %vm247 = vcmp.eq.s32.totalorder %v210, %v228
        %vm248 = vcmp.eq.s32.totalorder %v210, %v232
        %vm249 = vcmp.eq.s32.totalorder %v211, %v228
        %vm250 = vcmp.eq.s32.totalorder %v211, %v232
        %vm251 = vcmp.eq.s32.totalorder %v212, %v228
        %vm252 = vcmp.eq.s32.totalorder %v212, %v232
        %vm253 = vcmp.eq.s32.totalorder %v213, %v228
        %vm254 = vcmp.eq.s32.totalorder %v213, %v232
        %vm255 = vcmp.eq.s32.totalorder %v214, %v228
        %vm256 = vcmp.eq.s32.totalorder %v214, %v232
        %vm257 = vcmp.eq.s32.totalorder %v215, %v228
        %vm258 = vcmp.eq.s32.totalorder %v215, %v232
        %vm259 = vcmp.eq.s32.totalorder %v216, %v228
        %vm260 = vcmp.eq.s32.totalorder %v216, %v232
        %vm261 = vcmp.eq.s32.totalorder %v217, %v228
        %vm262 = vcmp.eq.s32.totalorder %v217, %v232
        %vm263 = vcmp.eq.s32.totalorder %v218, %v228
        %vm264 = vcmp.eq.s32.totalorder %v218, %v232
        %vm265 = vcmp.eq.s32.totalorder %v219, %v228
        %vm266 = vcmp.eq.s32.totalorder %v219, %v232
        %vm267 = vcmp.eq.s32.totalorder %v220, %v228
        %vm268 = vcmp.eq.s32.totalorder %v220, %v232
        %vm269 = vcmp.eq.s32.totalorder %v221, %v228
        %vm270 = vcmp.eq.s32.totalorder %v221, %v232
        %vm271 = vcmp.eq.s32.totalorder %v222, %v228
        %vm272 = vcmp.eq.s32.totalorder %v222, %v232
        %vm273 = vcmp.eq.s32.totalorder %v223, %v228
        %vm274 = vcmp.eq.s32.totalorder %v223, %v232
        %v275 = vsel %vm233, 1, 0
        %v276 = vsel %vm234, 1, 0
        %v277 = vsel %vm235, 1, 0
        %v278 = vsel %vm236, 1, 0
        %v279 = vsel %vm237, 1, 0
        %v280 = vsel %vm238, 1, 0
        %v281 = vsel %vm239, 1, 0
        %v282 = vsel %vm240, 1, 0
        %v283 = vsel %vm241, 1, 0
        %v284 = vsel %vm242, 1, 0
        %v285 = vsel %vm243, 1, 0
        %v286 = vsel %vm244, 1, 0
        %v287 = vsel %vm245, 1, 0
        %v288 = vsel %vm246, 1, 0
        %v289 = vsel %vm247, 1, 0
        %v290 = vsel %vm248, 1, 0
        %v291 = vsel %vm249, 1, 0
        %v292 = vsel %vm250, 1, 0
        %v293 = vsel %vm251, 1, 0
        %v294 = vsel %vm252, 1, 0
        %v295 = vsel %vm253, 1, 0
        %v296 = vsel %vm254, 1, 0
        %v297 = vsel %vm255, 1, 0
        %v298 = vsel %vm256, 1, 0
        %v299 = vsel %vm257, 1, 0
        %v300 = vsel %vm258, 1, 0
        %v301 = vsel %vm259, 1, 0
        %v302 = vsel %vm260, 1, 0
        %v303 = vsel %vm261, 1, 0
        %v304 = vsel %vm262, 1, 0
        %v305 = vsel %vm263, 1, 0
        %v306 = vsel %vm264, 1, 0
        %v307 = vsel %vm265, 1, 0
        %v308 = vsel %vm266, 1, 0
        %v309 = vsel %vm267, 1, 0
        %v310 = vsel %vm268, 1, 0
        %v311 = vsel %vm269, 1, 0
        %v312 = vsel %vm270, 1, 0
        %v313 = vsel %vm271, 1, 0
        %v314 = vsel %vm272, 1, 0
        %v315 = vsel %vm273, 1, 0
        %v316 = vsel %vm274, 1, 0
        %s317 = scalar_lea.vmem %s177, 1 [#allocation5]
        %v318 = vld [vmem:[%s317] ss:$8 sm:$0x3]
        %v319 = vlaneseq
        %v320 = vshrl.u32 %v319, 7
        %v321 = vsub.s32 0, %v320
        %v322 = vrot.slane %v318, %v321
        %v323 = vlaneseq
        %v324 = vshrl.u32 %v323, 7
        %v325 = vsub.s32 1, %v324
        %v326 = vrot.slane %v318, %v325
        %vm327 = vcmp.eq.s32.totalorder %v203, %v322
        %vm328 = vcmp.eq.s32.totalorder %v203, %v326
        %vm329 = vcmp.eq.s32.totalorder %v204, %v322
        %vm330 = vcmp.eq.s32.totalorder %v204, %v326
        %vm331 = vcmp.eq.s32.totalorder %v205, %v322
        %vm332 = vcmp.eq.s32.totalorder %v205, %v326
        %vm333 = vcmp.eq.s32.totalorder %v206, %v322
        %vm334 = vcmp.eq.s32.totalorder %v206, %v326
        %vm335 = vcmp.eq.s32.totalorder %v207, %v322
        %vm336 = vcmp.eq.s32.totalorder %v207, %v326
        %vm337 = vcmp.eq.s32.totalorder %v208, %v322
        %vm338 = vcmp.eq.s32.totalorder %v208, %v326
        %vm339 = vcmp.eq.s32.totalorder %v209, %v322
        %vm340 = vcmp.eq.s32.totalorder %v209, %v326
        %vm341 = vcmp.eq.s32.totalorder %v210, %v322
        %vm342 = vcmp.eq.s32.totalorder %v210, %v326
        %vm343 = vcmp.eq.s32.totalorder %v211, %v322
        %vm344 = vcmp.eq.s32.totalorder %v211, %v326
        %vm345 = vcmp.eq.s32.totalorder %v212, %v322
        %vm346 = vcmp.eq.s32.totalorder %v212, %v326
        %vm347 = vcmp.eq.s32.totalorder %v213, %v322
        %vm348 = vcmp.eq.s32.totalorder %v213, %v326
        %vm349 = vcmp.eq.s32.totalorder %v214, %v322
        %vm350 = vcmp.eq.s32.totalorder %v214, %v326
        %vm351 = vcmp.eq.s32.totalorder %v215, %v322
        %vm352 = vcmp.eq.s32.totalorder %v215, %v326
        %vm353 = vcmp.eq.s32.totalorder %v216, %v322
        %vm354 = vcmp.eq.s32.totalorder %v216, %v326
        %vm355 = vcmp.eq.s32.totalorder %v217, %v322
        %vm356 = vcmp.eq.s32.totalorder %v217, %v326
        %vm357 = vcmp.eq.s32.totalorder %v218, %v322
        %vm358 = vcmp.eq.s32.totalorder %v218, %v326
        %vm359 = vcmp.eq.s32.totalorder %v219, %v322
        %vm360 = vcmp.eq.s32.totalorder %v219, %v326
        %vm361 = vcmp.eq.s32.totalorder %v220, %v322
        %vm362 = vcmp.eq.s32.totalorder %v220, %v326
        %vm363 = vcmp.eq.s32.totalorder %v221, %v322
        %vm364 = vcmp.eq.s32.totalorder %v221, %v326
        %vm365 = vcmp.eq.s32.totalorder %v222, %v322
        %vm366 = vcmp.eq.s32.totalorder %v222, %v326
        %vm367 = vcmp.eq.s32.totalorder %v223, %v322
        %vm368 = vcmp.eq.s32.totalorder %v223, %v326
        %v369 = vsel %vm327, 1, 0
        %v370 = vsel %vm328, 1, 0
        %v371 = vsel %vm329, 1, 0
        %v372 = vsel %vm330, 1, 0
        %v373 = vsel %vm331, 1, 0
        %v374 = vsel %vm332, 1, 0
        %v375 = vsel %vm333, 1, 0
        %v376 = vsel %vm334, 1, 0
        %v377 = vsel %vm335, 1, 0
        %v378 = vsel %vm336, 1, 0
        %v379 = vsel %vm337, 1, 0
        %v380 = vsel %vm338, 1, 0
        %v381 = vsel %vm339, 1, 0
        %v382 = vsel %vm340, 1, 0
        %v383 = vsel %vm341, 1, 0
        %v384 = vsel %vm342, 1, 0
        %v385 = vsel %vm343, 1, 0
        %v386 = vsel %vm344, 1, 0
        %v387 = vsel %vm345, 1, 0
        %v388 = vsel %vm346, 1, 0
        %v389 = vsel %vm347, 1, 0
        %v390 = vsel %vm348, 1, 0
        %v391 = vsel %vm349, 1, 0
        %v392 = vsel %vm350, 1, 0
        %v393 = vsel %vm351, 1, 0
        %v394 = vsel %vm352, 1, 0
        %v395 = vsel %vm353, 1, 0
        %v396 = vsel %vm354, 1, 0
        %v397 = vsel %vm355, 1, 0
        %v398 = vsel %vm356, 1, 0
        %v399 = vsel %vm357, 1, 0
        %v400 = vsel %vm358, 1, 0
        %v401 = vsel %vm359, 1, 0
        %v402 = vsel %vm360, 1, 0
        %v403 = vsel %vm361, 1, 0
        %v404 = vsel %vm362, 1, 0
        %v405 = vsel %vm363, 1, 0
        %v406 = vsel %vm364, 1, 0
        %v407 = vsel %vm365, 1, 0
        %v408 = vsel %vm366, 1, 0
        %v409 = vsel %vm367, 1, 0
        %v410 = vsel %vm368, 1, 0
        %v411 = vadd.s32 %v275, %v369
        %v412 = vadd.s32 %v276, %v370
        %v413 = vadd.s32 %v277, %v371
        %v414 = vadd.s32 %v278, %v372
        %v415 = vadd.s32 %v279, %v373
        %v416 = vadd.s32 %v280, %v374
        %v417 = vadd.s32 %v281, %v375
        %v418 = vadd.s32 %v282, %v376
        %v419 = vadd.s32 %v283, %v377
        %v420 = vadd.s32 %v284, %v378
        %v421 = vadd.s32 %v285, %v379
        %v422 = vadd.s32 %v286, %v380
        %v423 = vadd.s32 %v287, %v381
        %v424 = vadd.s32 %v288, %v382
        %v425 = vadd.s32 %v289, %v383
        %v426 = vadd.s32 %v290, %v384
        %v427 = vadd.s32 %v291, %v385
        %v428 = vadd.s32 %v292, %v386
        %v429 = vadd.s32 %v293, %v387
        %v430 = vadd.s32 %v294, %v388
        %v431 = vadd.s32 %v295, %v389
        %v432 = vadd.s32 %v296, %v390
        %v433 = vadd.s32 %v297, %v391
        %v434 = vadd.s32 %v298, %v392
        %v435 = vadd.s32 %v299, %v393
        %v436 = vadd.s32 %v300, %v394
        %v437 = vadd.s32 %v301, %v395
        %v438 = vadd.s32 %v302, %v396
        %v439 = vadd.s32 %v303, %v397
        %v440 = vadd.s32 %v304, %v398
        %v441 = vadd.s32 %v305, %v399
        %v442 = vadd.s32 %v306, %v400
        %v443 = vadd.s32 %v307, %v401
        %v444 = vadd.s32 %v308, %v402
        %v445 = vadd.s32 %v309, %v403
        %v446 = vadd.s32 %v310, %v404
        %v447 = vadd.s32 %v311, %v405
        %v448 = vadd.s32 %v312, %v406
        %v449 = vadd.s32 %v313, %v407
        %v450 = vadd.s32 %v314, %v408
        %v451 = vadd.s32 %v315, %v409
        %v452 = vadd.s32 %v316, %v410
        %s453 = scalar_lea.vmem %s177, 2 [#allocation5]
        %v454 = vld [vmem:[%s453] ss:$8 sm:$0x3]
        %v455 = vlaneseq
        %v456 = vshrl.u32 %v455, 7
        %v457 = vsub.s32 0, %v456
        %v458 = vrot.slane %v454, %v457
        %v459 = vlaneseq
        %v460 = vshrl.u32 %v459, 7
        %v461 = vsub.s32 1, %v460
        %v462 = vrot.slane %v454, %v461
        %vm463 = vcmp.eq.s32.totalorder %v203, %v458
        %vm464 = vcmp.eq.s32.totalorder %v203, %v462
        %vm465 = vcmp.eq.s32.totalorder %v204, %v458
        %vm466 = vcmp.eq.s32.totalorder %v204, %v462
        %vm467 = vcmp.eq.s32.totalorder %v205, %v458
        %vm468 = vcmp.eq.s32.totalorder %v205, %v462
        %vm469 = vcmp.eq.s32.totalorder %v206, %v458
        %vm470 = vcmp.eq.s32.totalorder %v206, %v462
        %vm471 = vcmp.eq.s32.totalorder %v207, %v458
        %vm472 = vcmp.eq.s32.totalorder %v207, %v462
        %vm473 = vcmp.eq.s32.totalorder %v208, %v458
        %vm474 = vcmp.eq.s32.totalorder %v208, %v462
        %vm475 = vcmp.eq.s32.totalorder %v209, %v458
        %vm476 = vcmp.eq.s32.totalorder %v209, %v462
        %vm477 = vcmp.eq.s32.totalorder %v210, %v458
        %vm478 = vcmp.eq.s32.totalorder %v210, %v462
        %vm479 = vcmp.eq.s32.totalorder %v211, %v458
        %vm480 = vcmp.eq.s32.totalorder %v211, %v462
        %vm481 = vcmp.eq.s32.totalorder %v212, %v458
        %vm482 = vcmp.eq.s32.totalorder %v212, %v462
        %vm483 = vcmp.eq.s32.totalorder %v213, %v458
        %vm484 = vcmp.eq.s32.totalorder %v213, %v462
        %vm485 = vcmp.eq.s32.totalorder %v214, %v458
        %vm486 = vcmp.eq.s32.totalorder %v214, %v462
        %vm487 = vcmp.eq.s32.totalorder %v215, %v458
        %vm488 = vcmp.eq.s32.totalorder %v215, %v462
        %vm489 = vcmp.eq.s32.totalorder %v216, %v458
        %vm490 = vcmp.eq.s32.totalorder %v216, %v462
        %vm491 = vcmp.eq.s32.totalorder %v217, %v458
        %vm492 = vcmp.eq.s32.totalorder %v217, %v462
        %vm493 = vcmp.eq.s32.totalorder %v218, %v458
        %vm494 = vcmp.eq.s32.totalorder %v218, %v462
        %vm495 = vcmp.eq.s32.totalorder %v219, %v458
        %vm496 = vcmp.eq.s32.totalorder %v219, %v462
        %vm497 = vcmp.eq.s32.totalorder %v220, %v458
        %vm498 = vcmp.eq.s32.totalorder %v220, %v462
        %vm499 = vcmp.eq.s32.totalorder %v221, %v458
        %vm500 = vcmp.eq.s32.totalorder %v221, %v462
        %vm501 = vcmp.eq.s32.totalorder %v222, %v458
        %vm502 = vcmp.eq.s32.totalorder %v222, %v462
        %vm503 = vcmp.eq.s32.totalorder %v223, %v458
        %vm504 = vcmp.eq.s32.totalorder %v223, %v462
        %v505 = vsel %vm463, 1, 0
        %v506 = vsel %vm464, 1, 0
        %v507 = vsel %vm465, 1, 0
        %v508 = vsel %vm466, 1, 0
        %v509 = vsel %vm467, 1, 0
        %v510 = vsel %vm468, 1, 0
        %v511 = vsel %vm469, 1, 0
        %v512 = vsel %vm470, 1, 0
        %v513 = vsel %vm471, 1, 0
        %v514 = vsel %vm472, 1, 0
        %v515 = vsel %vm473, 1, 0
        %v516 = vsel %vm474, 1, 0
        %v517 = vsel %vm475, 1, 0
        %v518 = vsel %vm476, 1, 0
        %v519 = vsel %vm477, 1, 0
        %v520 = vsel %vm478, 1, 0
        %v521 = vsel %vm479, 1, 0
        %v522 = vsel %vm480, 1, 0
        %v523 = vsel %vm481, 1, 0
        %v524 = vsel %vm482, 1, 0
        %v525 = vsel %vm483, 1, 0
        %v526 = vsel %vm484, 1, 0
        %v527 = vsel %vm485, 1, 0
        %v528 = vsel %vm486, 1, 0
        %v529 = vsel %vm487, 1, 0
        %v530 = vsel %vm488, 1, 0
        %v531 = vsel %vm489, 1, 0
        %v532 = vsel %vm490, 1, 0
        %v533 = vsel %vm491, 1, 0
        %v534 = vsel %vm492, 1, 0
        %v535 = vsel %vm493, 1, 0
        %v536 = vsel %vm494, 1, 0
        %v537 = vsel %vm495, 1, 0
        %v538 = vsel %vm496, 1, 0
        %v539 = vsel %vm497, 1, 0
        %v540 = vsel %vm498, 1, 0
        %v541 = vsel %vm499, 1, 0
        %v542 = vsel %vm500, 1, 0
        %v543 = vsel %vm501, 1, 0
        %v544 = vsel %vm502, 1, 0
        %v545 = vsel %vm503, 1, 0
        %v546 = vsel %vm504, 1, 0
        %v547 = vadd.s32 %v411, %v505
        %v548 = vadd.s32 %v412, %v506
        %v549 = vadd.s32 %v413, %v507
        %v550 = vadd.s32 %v414, %v508
        %v551 = vadd.s32 %v415, %v509
        %v552 = vadd.s32 %v416, %v510
        %v553 = vadd.s32 %v417, %v511
        %v554 = vadd.s32 %v418, %v512
        %v555 = vadd.s32 %v419, %v513
        %v556 = vadd.s32 %v420, %v514
        %v557 = vadd.s32 %v421, %v515
        %v558 = vadd.s32 %v422, %v516
        %v559 = vadd.s32 %v423, %v517
        %v560 = vadd.s32 %v424, %v518
        %v561 = vadd.s32 %v425, %v519
        %v562 = vadd.s32 %v426, %v520
        %v563 = vadd.s32 %v427, %v521
        %v564 = vadd.s32 %v428, %v522
        %v565 = vadd.s32 %v429, %v523
        %v566 = vadd.s32 %v430, %v524
        %v567 = vadd.s32 %v431, %v525
        %v568 = vadd.s32 %v432, %v526
        %v569 = vadd.s32 %v433, %v527
        %v570 = vadd.s32 %v434, %v528
        %v571 = vadd.s32 %v435, %v529
        %v572 = vadd.s32 %v436, %v530
        %v573 = vadd.s32 %v437, %v531
        %v574 = vadd.s32 %v438, %v532
        %v575 = vadd.s32 %v439, %v533
        %v576 = vadd.s32 %v440, %v534
        %v577 = vadd.s32 %v441, %v535
        %v578 = vadd.s32 %v442, %v536
        %v579 = vadd.s32 %v443, %v537
        %v580 = vadd.s32 %v444, %v538
        %v581 = vadd.s32 %v445, %v539
        %v582 = vadd.s32 %v446, %v540
        %v583 = vadd.s32 %v447, %v541
        %v584 = vadd.s32 %v448, %v542
        %v585 = vadd.s32 %v449, %v543
        %v586 = vadd.s32 %v450, %v544
        %v587 = vadd.s32 %v451, %v545
        %v588 = vadd.s32 %v452, %v546
        %s589 = scalar_lea.vmem %s177, 3 [#allocation5]
        %v590 = vld [vmem:[%s589] ss:$8 sm:$0x3]
        %v591 = vlaneseq
        %v592 = vshrl.u32 %v591, 7
        %v593 = vsub.s32 0, %v592
        %v594 = vrot.slane %v590, %v593
        %v595 = vlaneseq
        %v596 = vshrl.u32 %v595, 7
        %v597 = vsub.s32 1, %v596
        %v598 = vrot.slane %v590, %v597
        %vm599 = vcmp.eq.s32.totalorder %v203, %v594
        %vm600 = vcmp.eq.s32.totalorder %v203, %v598
        %vm601 = vcmp.eq.s32.totalorder %v204, %v594
        %vm602 = vcmp.eq.s32.totalorder %v204, %v598
        %vm603 = vcmp.eq.s32.totalorder %v205, %v594
        %vm604 = vcmp.eq.s32.totalorder %v205, %v598
        %vm605 = vcmp.eq.s32.totalorder %v206, %v594
        %vm606 = vcmp.eq.s32.totalorder %v206, %v598
        %vm607 = vcmp.eq.s32.totalorder %v207, %v594
        %vm608 = vcmp.eq.s32.totalorder %v207, %v598
        %vm609 = vcmp.eq.s32.totalorder %v208, %v594
        %vm610 = vcmp.eq.s32.totalorder %v208, %v598
        %vm611 = vcmp.eq.s32.totalorder %v209, %v594
        %vm612 = vcmp.eq.s32.totalorder %v209, %v598
        %vm613 = vcmp.eq.s32.totalorder %v210, %v594
        %vm614 = vcmp.eq.s32.totalorder %v210, %v598
        %vm615 = vcmp.eq.s32.totalorder %v211, %v594
        %vm616 = vcmp.eq.s32.totalorder %v211, %v598
        %vm617 = vcmp.eq.s32.totalorder %v212, %v594
        %vm618 = vcmp.eq.s32.totalorder %v212, %v598
        %vm619 = vcmp.eq.s32.totalorder %v213, %v594
        %vm620 = vcmp.eq.s32.totalorder %v213, %v598
        %vm621 = vcmp.eq.s32.totalorder %v214, %v594
        %vm622 = vcmp.eq.s32.totalorder %v214, %v598
        %vm623 = vcmp.eq.s32.totalorder %v215, %v594
        %vm624 = vcmp.eq.s32.totalorder %v215, %v598
        %vm625 = vcmp.eq.s32.totalorder %v216, %v594
        %vm626 = vcmp.eq.s32.totalorder %v216, %v598
        %vm627 = vcmp.eq.s32.totalorder %v217, %v594
        %vm628 = vcmp.eq.s32.totalorder %v217, %v598
        %vm629 = vcmp.eq.s32.totalorder %v218, %v594
        %vm630 = vcmp.eq.s32.totalorder %v218, %v598
        %vm631 = vcmp.eq.s32.totalorder %v219, %v594
        %vm632 = vcmp.eq.s32.totalorder %v219, %v598
        %vm633 = vcmp.eq.s32.totalorder %v220, %v594
        %vm634 = vcmp.eq.s32.totalorder %v220, %v598
        %vm635 = vcmp.eq.s32.totalorder %v221, %v594
        %vm636 = vcmp.eq.s32.totalorder %v221, %v598
        %vm637 = vcmp.eq.s32.totalorder %v222, %v594
        %vm638 = vcmp.eq.s32.totalorder %v222, %v598
        %vm639 = vcmp.eq.s32.totalorder %v223, %v594
        %vm640 = vcmp.eq.s32.totalorder %v223, %v598
        %v641 = vsel %vm599, 1, 0
        %v642 = vsel %vm600, 1, 0
        %v643 = vsel %vm601, 1, 0
        %v644 = vsel %vm602, 1, 0
        %v645 = vsel %vm603, 1, 0
        %v646 = vsel %vm604, 1, 0
        %v647 = vsel %vm605, 1, 0
        %v648 = vsel %vm606, 1, 0
        %v649 = vsel %vm607, 1, 0
        %v650 = vsel %vm608, 1, 0
        %v651 = vsel %vm609, 1, 0
        %v652 = vsel %vm610, 1, 0
        %v653 = vsel %vm611, 1, 0
        %v654 = vsel %vm612, 1, 0
        %v655 = vsel %vm613, 1, 0
        %v656 = vsel %vm614, 1, 0
        %v657 = vsel %vm615, 1, 0
        %v658 = vsel %vm616, 1, 0
        %v659 = vsel %vm617, 1, 0
        %v660 = vsel %vm618, 1, 0
        %v661 = vsel %vm619, 1, 0
        %v662 = vsel %vm620, 1, 0
        %v663 = vsel %vm621, 1, 0
        %v664 = vsel %vm622, 1, 0
        %v665 = vsel %vm623, 1, 0
        %v666 = vsel %vm624, 1, 0
        %v667 = vsel %vm625, 1, 0
        %v668 = vsel %vm626, 1, 0
        %v669 = vsel %vm627, 1, 0
        %v670 = vsel %vm628, 1, 0
        %v671 = vsel %vm629, 1, 0
        %v672 = vsel %vm630, 1, 0
        %v673 = vsel %vm631, 1, 0
        %v674 = vsel %vm632, 1, 0
        %v675 = vsel %vm633, 1, 0
        %v676 = vsel %vm634, 1, 0
        %v677 = vsel %vm635, 1, 0
        %v678 = vsel %vm636, 1, 0
        %v679 = vsel %vm637, 1, 0
        %v680 = vsel %vm638, 1, 0
        %v681 = vsel %vm639, 1, 0
        %v682 = vsel %vm640, 1, 0
        %v683 = vadd.s32 %v547, %v641
        %v684 = vadd.s32 %v548, %v642
        %v685 = vadd.s32 %v549, %v643
        %v686 = vadd.s32 %v550, %v644
        %v687 = vadd.s32 %v551, %v645
        %v688 = vadd.s32 %v552, %v646
        %v689 = vadd.s32 %v553, %v647
        %v690 = vadd.s32 %v554, %v648
        %v691 = vadd.s32 %v555, %v649
        %v692 = vadd.s32 %v556, %v650
        %v693 = vadd.s32 %v557, %v651
        %v694 = vadd.s32 %v558, %v652
        %v695 = vadd.s32 %v559, %v653
        %v696 = vadd.s32 %v560, %v654
        %v697 = vadd.s32 %v561, %v655
        %v698 = vadd.s32 %v562, %v656
        %v699 = vadd.s32 %v563, %v657
        %v700 = vadd.s32 %v564, %v658
        %v701 = vadd.s32 %v565, %v659
        %v702 = vadd.s32 %v566, %v660
        %v703 = vadd.s32 %v567, %v661
        %v704 = vadd.s32 %v568, %v662
        %v705 = vadd.s32 %v569, %v663
        %v706 = vadd.s32 %v570, %v664
        %v707 = vadd.s32 %v571, %v665
        %v708 = vadd.s32 %v572, %v666
        %v709 = vadd.s32 %v573, %v667
        %v710 = vadd.s32 %v574, %v668
        %v711 = vadd.s32 %v575, %v669
        %v712 = vadd.s32 %v576, %v670
        %v713 = vadd.s32 %v577, %v671
        %v714 = vadd.s32 %v578, %v672
        %v715 = vadd.s32 %v579, %v673
        %v716 = vadd.s32 %v580, %v674
        %v717 = vadd.s32 %v581, %v675
        %v718 = vadd.s32 %v582, %v676
        %v719 = vadd.s32 %v583, %v677
        %v720 = vadd.s32 %v584, %v678
        %v721 = vadd.s32 %v585, %v679
        %v722 = vadd.s32 %v586, %v680
        %v723 = vadd.s32 %v587, %v681
        %v724 = vadd.s32 %v588, %v682
        %s725 = scalar_lea.vmem %s177, 4 [#allocation5]
        %v726 = vld [vmem:[%s725] ss:$8 sm:$0x3]
        %v727 = vlaneseq
        %v728 = vshrl.u32 %v727, 7
        %v729 = vsub.s32 0, %v728
        %v730 = vrot.slane %v726, %v729
        %v731 = vlaneseq
        %v732 = vshrl.u32 %v731, 7
        %v733 = vsub.s32 1, %v732
        %v734 = vrot.slane %v726, %v733
        %vm735 = vcmp.eq.s32.totalorder %v203, %v730
        %vm736 = vcmp.eq.s32.totalorder %v203, %v734
        %vm737 = vcmp.eq.s32.totalorder %v204, %v730
        %vm738 = vcmp.eq.s32.totalorder %v204, %v734
        %vm739 = vcmp.eq.s32.totalorder %v205, %v730
        %vm740 = vcmp.eq.s32.totalorder %v205, %v734
        %vm741 = vcmp.eq.s32.totalorder %v206, %v730
        %vm742 = vcmp.eq.s32.totalorder %v206, %v734
        %vm743 = vcmp.eq.s32.totalorder %v207, %v730
        %vm744 = vcmp.eq.s32.totalorder %v207, %v734
        %vm745 = vcmp.eq.s32.totalorder %v208, %v730
        %vm746 = vcmp.eq.s32.totalorder %v208, %v734
        %vm747 = vcmp.eq.s32.totalorder %v209, %v730
        %vm748 = vcmp.eq.s32.totalorder %v209, %v734
        %vm749 = vcmp.eq.s32.totalorder %v210, %v730
        %vm750 = vcmp.eq.s32.totalorder %v210, %v734
        %vm751 = vcmp.eq.s32.totalorder %v211, %v730
        %vm752 = vcmp.eq.s32.totalorder %v211, %v734
        %vm753 = vcmp.eq.s32.totalorder %v212, %v730
        %vm754 = vcmp.eq.s32.totalorder %v212, %v734
        %vm755 = vcmp.eq.s32.totalorder %v213, %v730
        %vm756 = vcmp.eq.s32.totalorder %v213, %v734
        %vm757 = vcmp.eq.s32.totalorder %v214, %v730
        %vm758 = vcmp.eq.s32.totalorder %v214, %v734
        %vm759 = vcmp.eq.s32.totalorder %v215, %v730
        %vm760 = vcmp.eq.s32.totalorder %v215, %v734
        %vm761 = vcmp.eq.s32.totalorder %v216, %v730
        %vm762 = vcmp.eq.s32.totalorder %v216, %v734
        %vm763 = vcmp.eq.s32.totalorder %v217, %v730
        %vm764 = vcmp.eq.s32.totalorder %v217, %v734
        %vm765 = vcmp.eq.s32.totalorder %v218, %v730
        %vm766 = vcmp.eq.s32.totalorder %v218, %v734
        %vm767 = vcmp.eq.s32.totalorder %v219, %v730
        %vm768 = vcmp.eq.s32.totalorder %v219, %v734
        %vm769 = vcmp.eq.s32.totalorder %v220, %v730
        %vm770 = vcmp.eq.s32.totalorder %v220, %v734
        %vm771 = vcmp.eq.s32.totalorder %v221, %v730
        %vm772 = vcmp.eq.s32.totalorder %v221, %v734
        %vm773 = vcmp.eq.s32.totalorder %v222, %v730
        %vm774 = vcmp.eq.s32.totalorder %v222, %v734
        %vm775 = vcmp.eq.s32.totalorder %v223, %v730
        %vm776 = vcmp.eq.s32.totalorder %v223, %v734
        %v777 = vsel %vm735, 1, 0
        %v778 = vsel %vm736, 1, 0
        %v779 = vsel %vm737, 1, 0
        %v780 = vsel %vm738, 1, 0
        %v781 = vsel %vm739, 1, 0
        %v782 = vsel %vm740, 1, 0
        %v783 = vsel %vm741, 1, 0
        %v784 = vsel %vm742, 1, 0
        %v785 = vsel %vm743, 1, 0
        %v786 = vsel %vm744, 1, 0
        %v787 = vsel %vm745, 1, 0
        %v788 = vsel %vm746, 1, 0
        %v789 = vsel %vm747, 1, 0
        %v790 = vsel %vm748, 1, 0
        %v791 = vsel %vm749, 1, 0
        %v792 = vsel %vm750, 1, 0
        %v793 = vsel %vm751, 1, 0
        %v794 = vsel %vm752, 1, 0
        %v795 = vsel %vm753, 1, 0
        %v796 = vsel %vm754, 1, 0
        %v797 = vsel %vm755, 1, 0
        %v798 = vsel %vm756, 1, 0
        %v799 = vsel %vm757, 1, 0
        %v800 = vsel %vm758, 1, 0
        %v801 = vsel %vm759, 1, 0
        %v802 = vsel %vm760, 1, 0
        %v803 = vsel %vm761, 1, 0
        %v804 = vsel %vm762, 1, 0
        %v805 = vsel %vm763, 1, 0
        %v806 = vsel %vm764, 1, 0
        %v807 = vsel %vm765, 1, 0
        %v808 = vsel %vm766, 1, 0
        %v809 = vsel %vm767, 1, 0
        %v810 = vsel %vm768, 1, 0
        %v811 = vsel %vm769, 1, 0
        %v812 = vsel %vm770, 1, 0
        %v813 = vsel %vm771, 1, 0
        %v814 = vsel %vm772, 1, 0
        %v815 = vsel %vm773, 1, 0
        %v816 = vsel %vm774, 1, 0
        %v817 = vsel %vm775, 1, 0
        %v818 = vsel %vm776, 1, 0
        %v819 = vadd.s32 %v683, %v777
        %v820 = vadd.s32 %v684, %v778
        %v821 = vadd.s32 %v685, %v779
        %v822 = vadd.s32 %v686, %v780
        %v823 = vadd.s32 %v687, %v781
        %v824 = vadd.s32 %v688, %v782
        %v825 = vadd.s32 %v689, %v783
        %v826 = vadd.s32 %v690, %v784
        %v827 = vadd.s32 %v691, %v785
        %v828 = vadd.s32 %v692, %v786
        %v829 = vadd.s32 %v693, %v787
        %v830 = vadd.s32 %v694, %v788
        %v831 = vadd.s32 %v695, %v789
        %v832 = vadd.s32 %v696, %v790
        %v833 = vadd.s32 %v697, %v791
        %v834 = vadd.s32 %v698, %v792
        %v835 = vadd.s32 %v699, %v793
        %v836 = vadd.s32 %v700, %v794
        %v837 = vadd.s32 %v701, %v795
        %v838 = vadd.s32 %v702, %v796
        %v839 = vadd.s32 %v703, %v797
        %v840 = vadd.s32 %v704, %v798
        %v841 = vadd.s32 %v705, %v799
        %v842 = vadd.s32 %v706, %v800
        %v843 = vadd.s32 %v707, %v801
        %v844 = vadd.s32 %v708, %v802
        %v845 = vadd.s32 %v709, %v803
        %v846 = vadd.s32 %v710, %v804
        %v847 = vadd.s32 %v711, %v805
        %v848 = vadd.s32 %v712, %v806
        %v849 = vadd.s32 %v713, %v807
        %v850 = vadd.s32 %v714, %v808
        %v851 = vadd.s32 %v715, %v809
        %v852 = vadd.s32 %v716, %v810
        %v853 = vadd.s32 %v717, %v811
        %v854 = vadd.s32 %v718, %v812
        %v855 = vadd.s32 %v719, %v813
        %v856 = vadd.s32 %v720, %v814
        %v857 = vadd.s32 %v721, %v815
        %v858 = vadd.s32 %v722, %v816
        %v859 = vadd.s32 %v723, %v817
        %v860 = vadd.s32 %v724, %v818
        %s861 = scalar_lea.vmem %s177, 5 [#allocation5]
        %v862 = vld [vmem:[%s861] ss:$8 sm:$0x3]
        %v863 = vlaneseq
        %v864 = vshrl.u32 %v863, 7
        %v865 = vsub.s32 0, %v864
        %v866 = vrot.slane %v862, %v865
        %v867 = vlaneseq
        %v868 = vshrl.u32 %v867, 7
        %v869 = vsub.s32 1, %v868
        %v870 = vrot.slane %v862, %v869
        %vm871 = vcmp.eq.s32.totalorder %v203, %v866
        %vm872 = vcmp.eq.s32.totalorder %v203, %v870
        %vm873 = vcmp.eq.s32.totalorder %v204, %v866
        %vm874 = vcmp.eq.s32.totalorder %v204, %v870
        %vm875 = vcmp.eq.s32.totalorder %v205, %v866
        %vm876 = vcmp.eq.s32.totalorder %v205, %v870
        %vm877 = vcmp.eq.s32.totalorder %v206, %v866
        %vm878 = vcmp.eq.s32.totalorder %v206, %v870
        %vm879 = vcmp.eq.s32.totalorder %v207, %v866
        %vm880 = vcmp.eq.s32.totalorder %v207, %v870
        %vm881 = vcmp.eq.s32.totalorder %v208, %v866
        %vm882 = vcmp.eq.s32.totalorder %v208, %v870
        %vm883 = vcmp.eq.s32.totalorder %v209, %v866
        %vm884 = vcmp.eq.s32.totalorder %v209, %v870
        %vm885 = vcmp.eq.s32.totalorder %v210, %v866
        %vm886 = vcmp.eq.s32.totalorder %v210, %v870
        %vm887 = vcmp.eq.s32.totalorder %v211, %v866
        %vm888 = vcmp.eq.s32.totalorder %v211, %v870
        %vm889 = vcmp.eq.s32.totalorder %v212, %v866
        %vm890 = vcmp.eq.s32.totalorder %v212, %v870
        %vm891 = vcmp.eq.s32.totalorder %v213, %v866
        %vm892 = vcmp.eq.s32.totalorder %v213, %v870
        %vm893 = vcmp.eq.s32.totalorder %v214, %v866
        %vm894 = vcmp.eq.s32.totalorder %v214, %v870
        %vm895 = vcmp.eq.s32.totalorder %v215, %v866
        %vm896 = vcmp.eq.s32.totalorder %v215, %v870
        %vm897 = vcmp.eq.s32.totalorder %v216, %v866
        %vm898 = vcmp.eq.s32.totalorder %v216, %v870
        %vm899 = vcmp.eq.s32.totalorder %v217, %v866
        %vm900 = vcmp.eq.s32.totalorder %v217, %v870
        %vm901 = vcmp.eq.s32.totalorder %v218, %v866
        %vm902 = vcmp.eq.s32.totalorder %v218, %v870
        %vm903 = vcmp.eq.s32.totalorder %v219, %v866
        %vm904 = vcmp.eq.s32.totalorder %v219, %v870
        %vm905 = vcmp.eq.s32.totalorder %v220, %v866
        %vm906 = vcmp.eq.s32.totalorder %v220, %v870
        %vm907 = vcmp.eq.s32.totalorder %v221, %v866
        %vm908 = vcmp.eq.s32.totalorder %v221, %v870
        %vm909 = vcmp.eq.s32.totalorder %v222, %v866
        %vm910 = vcmp.eq.s32.totalorder %v222, %v870
        %vm911 = vcmp.eq.s32.totalorder %v223, %v866
        %vm912 = vcmp.eq.s32.totalorder %v223, %v870
        %v913 = vsel %vm871, 1, 0
        %v914 = vsel %vm872, 1, 0
        %v915 = vsel %vm873, 1, 0
        %v916 = vsel %vm874, 1, 0
        %v917 = vsel %vm875, 1, 0
        %v918 = vsel %vm876, 1, 0
        %v919 = vsel %vm877, 1, 0
        %v920 = vsel %vm878, 1, 0
        %v921 = vsel %vm879, 1, 0
        %v922 = vsel %vm880, 1, 0
        %v923 = vsel %vm881, 1, 0
        %v924 = vsel %vm882, 1, 0
        %v925 = vsel %vm883, 1, 0
        %v926 = vsel %vm884, 1, 0
        %v927 = vsel %vm885, 1, 0
        %v928 = vsel %vm886, 1, 0
        %v929 = vsel %vm887, 1, 0
        %v930 = vsel %vm888, 1, 0
        %v931 = vsel %vm889, 1, 0
        %v932 = vsel %vm890, 1, 0
        %v933 = vsel %vm891, 1, 0
        %v934 = vsel %vm892, 1, 0
        %v935 = vsel %vm893, 1, 0
        %v936 = vsel %vm894, 1, 0
        %v937 = vsel %vm895, 1, 0
        %v938 = vsel %vm896, 1, 0
        %v939 = vsel %vm897, 1, 0
        %v940 = vsel %vm898, 1, 0
        %v941 = vsel %vm899, 1, 0
        %v942 = vsel %vm900, 1, 0
        %v943 = vsel %vm901, 1, 0
        %v944 = vsel %vm902, 1, 0
        %v945 = vsel %vm903, 1, 0
        %v946 = vsel %vm904, 1, 0
        %v947 = vsel %vm905, 1, 0
        %v948 = vsel %vm906, 1, 0
        %v949 = vsel %vm907, 1, 0
        %v950 = vsel %vm908, 1, 0
        %v951 = vsel %vm909, 1, 0
        %v952 = vsel %vm910, 1, 0
        %v953 = vsel %vm911, 1, 0
        %v954 = vsel %vm912, 1, 0
        %v955 = vadd.s32 %v819, %v913
        %v956 = vadd.s32 %v820, %v914
        %v957 = vadd.s32 %v821, %v915
        %v958 = vadd.s32 %v822, %v916
        %v959 = vadd.s32 %v823, %v917
        %v960 = vadd.s32 %v824, %v918
        %v961 = vadd.s32 %v825, %v919
        %v962 = vadd.s32 %v826, %v920
        %v963 = vadd.s32 %v827, %v921
        %v964 = vadd.s32 %v828, %v922
        %v965 = vadd.s32 %v829, %v923
        %v966 = vadd.s32 %v830, %v924
        %v967 = vadd.s32 %v831, %v925
        %v968 = vadd.s32 %v832, %v926
        %v969 = vadd.s32 %v833, %v927
        %v970 = vadd.s32 %v834, %v928
        %v971 = vadd.s32 %v835, %v929
        %v972 = vadd.s32 %v836, %v930
        %v973 = vadd.s32 %v837, %v931
        %v974 = vadd.s32 %v838, %v932
        %v975 = vadd.s32 %v839, %v933
        %v976 = vadd.s32 %v840, %v934
        %v977 = vadd.s32 %v841, %v935
        %v978 = vadd.s32 %v842, %v936
        %v979 = vadd.s32 %v843, %v937
        %v980 = vadd.s32 %v844, %v938
        %v981 = vadd.s32 %v845, %v939
        %v982 = vadd.s32 %v846, %v940
        %v983 = vadd.s32 %v847, %v941
        %v984 = vadd.s32 %v848, %v942
        %v985 = vadd.s32 %v849, %v943
        %v986 = vadd.s32 %v850, %v944
        %v987 = vadd.s32 %v851, %v945
        %v988 = vadd.s32 %v852, %v946
        %v989 = vadd.s32 %v853, %v947
        %v990 = vadd.s32 %v854, %v948
        %v991 = vadd.s32 %v855, %v949
        %v992 = vadd.s32 %v856, %v950
        %v993 = vadd.s32 %v857, %v951
        %v994 = vadd.s32 %v858, %v952
        %v995 = vadd.s32 %v859, %v953
        %v996 = vadd.s32 %v860, %v954
        %s997 = scalar_lea.vmem %s177, 6 [#allocation5]
        %v998 = vld [vmem:[%s997] ss:$8 sm:$0x3]
        %v999 = vlaneseq
        %v1000 = vshrl.u32 %v999, 7
        %v1001 = vsub.s32 0, %v1000
        %v1002 = vrot.slane %v998, %v1001
        %v1003 = vlaneseq
        %v1004 = vshrl.u32 %v1003, 7
        %v1005 = vsub.s32 1, %v1004
        %v1006 = vrot.slane %v998, %v1005
        %vm1007 = vcmp.eq.s32.totalorder %v203, %v1002
        %vm1008 = vcmp.eq.s32.totalorder %v203, %v1006
        %vm1009 = vcmp.eq.s32.totalorder %v204, %v1002
        %vm1010 = vcmp.eq.s32.totalorder %v204, %v1006
        %vm1011 = vcmp.eq.s32.totalorder %v205, %v1002
        %vm1012 = vcmp.eq.s32.totalorder %v205, %v1006
        %vm1013 = vcmp.eq.s32.totalorder %v206, %v1002
        %vm1014 = vcmp.eq.s32.totalorder %v206, %v1006
        %vm1015 = vcmp.eq.s32.totalorder %v207, %v1002
        %vm1016 = vcmp.eq.s32.totalorder %v207, %v1006
        %vm1017 = vcmp.eq.s32.totalorder %v208, %v1002
        %vm1018 = vcmp.eq.s32.totalorder %v208, %v1006
        %vm1019 = vcmp.eq.s32.totalorder %v209, %v1002
        %vm1020 = vcmp.eq.s32.totalorder %v209, %v1006
        %vm1021 = vcmp.eq.s32.totalorder %v210, %v1002
        %vm1022 = vcmp.eq.s32.totalorder %v210, %v1006
        %vm1023 = vcmp.eq.s32.totalorder %v211, %v1002
        %vm1024 = vcmp.eq.s32.totalorder %v211, %v1006
        %vm1025 = vcmp.eq.s32.totalorder %v212, %v1002
        %vm1026 = vcmp.eq.s32.totalorder %v212, %v1006
        %vm1027 = vcmp.eq.s32.totalorder %v213, %v1002
        %vm1028 = vcmp.eq.s32.totalorder %v213, %v1006
        %vm1029 = vcmp.eq.s32.totalorder %v214, %v1002
        %vm1030 = vcmp.eq.s32.totalorder %v214, %v1006
        %vm1031 = vcmp.eq.s32.totalorder %v215, %v1002
        %vm1032 = vcmp.eq.s32.totalorder %v215, %v1006
        %vm1033 = vcmp.eq.s32.totalorder %v216, %v1002
        %vm1034 = vcmp.eq.s32.totalorder %v216, %v1006
        %vm1035 = vcmp.eq.s32.totalorder %v217, %v1002
        %vm1036 = vcmp.eq.s32.totalorder %v217, %v1006
        %vm1037 = vcmp.eq.s32.totalorder %v218, %v1002
        %vm1038 = vcmp.eq.s32.totalorder %v218, %v1006
        %vm1039 = vcmp.eq.s32.totalorder %v219, %v1002
        %vm1040 = vcmp.eq.s32.totalorder %v219, %v1006
        %vm1041 = vcmp.eq.s32.totalorder %v220, %v1002
        %vm1042 = vcmp.eq.s32.totalorder %v220, %v1006
        %vm1043 = vcmp.eq.s32.totalorder %v221, %v1002
        %vm1044 = vcmp.eq.s32.totalorder %v221, %v1006
        %vm1045 = vcmp.eq.s32.totalorder %v222, %v1002
        %vm1046 = vcmp.eq.s32.totalorder %v222, %v1006
        %vm1047 = vcmp.eq.s32.totalorder %v223, %v1002
        %vm1048 = vcmp.eq.s32.totalorder %v223, %v1006
        %v1049 = vsel %vm1007, 1, 0
        %v1050 = vsel %vm1008, 1, 0
        %v1051 = vsel %vm1009, 1, 0
        %v1052 = vsel %vm1010, 1, 0
        %v1053 = vsel %vm1011, 1, 0
        %v1054 = vsel %vm1012, 1, 0
        %v1055 = vsel %vm1013, 1, 0
        %v1056 = vsel %vm1014, 1, 0
        %v1057 = vsel %vm1015, 1, 0
        %v1058 = vsel %vm1016, 1, 0
        %v1059 = vsel %vm1017, 1, 0
        %v1060 = vsel %vm1018, 1, 0
        %v1061 = vsel %vm1019, 1, 0
        %v1062 = vsel %vm1020, 1, 0
        %v1063 = vsel %vm1021, 1, 0
        %v1064 = vsel %vm1022, 1, 0
        %v1065 = vsel %vm1023, 1, 0
        %v1066 = vsel %vm1024, 1, 0
        %v1067 = vsel %vm1025, 1, 0
        %v1068 = vsel %vm1026, 1, 0
        %v1069 = vsel %vm1027, 1, 0
        %v1070 = vsel %vm1028, 1, 0
        %v1071 = vsel %vm1029, 1, 0
        %v1072 = vsel %vm1030, 1, 0
        %v1073 = vsel %vm1031, 1, 0
        %v1074 = vsel %vm1032, 1, 0
        %v1075 = vsel %vm1033, 1, 0
        %v1076 = vsel %vm1034, 1, 0
        %v1077 = vsel %vm1035, 1, 0
        %v1078 = vsel %vm1036, 1, 0
        %v1079 = vsel %vm1037, 1, 0
        %v1080 = vsel %vm1038, 1, 0
        %v1081 = vsel %vm1039, 1, 0
        %v1082 = vsel %vm1040, 1, 0
        %v1083 = vsel %vm1041, 1, 0
        %v1084 = vsel %vm1042, 1, 0
        %v1085 = vsel %vm1043, 1, 0
        %v1086 = vsel %vm1044, 1, 0
        %v1087 = vsel %vm1045, 1, 0
        %v1088 = vsel %vm1046, 1, 0
        %v1089 = vsel %vm1047, 1, 0
        %v1090 = vsel %vm1048, 1, 0
        %v1091 = vadd.s32 %v955, %v1049
        %v1092 = vadd.s32 %v956, %v1050
        %v1093 = vadd.s32 %v957, %v1051
        %v1094 = vadd.s32 %v958, %v1052
        %v1095 = vadd.s32 %v959, %v1053
        %v1096 = vadd.s32 %v960, %v1054
        %v1097 = vadd.s32 %v961, %v1055
        %v1098 = vadd.s32 %v962, %v1056
        %v1099 = vadd.s32 %v963, %v1057
        %v1100 = vadd.s32 %v964, %v1058
        %v1101 = vadd.s32 %v965, %v1059
        %v1102 = vadd.s32 %v966, %v1060
        %v1103 = vadd.s32 %v967, %v1061
        %v1104 = vadd.s32 %v968, %v1062
        %v1105 = vadd.s32 %v969, %v1063
        %v1106 = vadd.s32 %v970, %v1064
        %v1107 = vadd.s32 %v971, %v1065
        %v1108 = vadd.s32 %v972, %v1066
        %v1109 = vadd.s32 %v973, %v1067
        %v1110 = vadd.s32 %v974, %v1068
        %v1111 = vadd.s32 %v975, %v1069
        %v1112 = vadd.s32 %v976, %v1070
        %v1113 = vadd.s32 %v977, %v1071
        %v1114 = vadd.s32 %v978, %v1072
        %v1115 = vadd.s32 %v979, %v1073
        %v1116 = vadd.s32 %v980, %v1074
        %v1117 = vadd.s32 %v981, %v1075
        %v1118 = vadd.s32 %v982, %v1076
        %v1119 = vadd.s32 %v983, %v1077
        %v1120 = vadd.s32 %v984, %v1078
        %v1121 = vadd.s32 %v985, %v1079
        %v1122 = vadd.s32 %v986, %v1080
        %v1123 = vadd.s32 %v987, %v1081
        %v1124 = vadd.s32 %v988, %v1082
        %v1125 = vadd.s32 %v989, %v1083
        %v1126 = vadd.s32 %v990, %v1084
        %v1127 = vadd.s32 %v991, %v1085
        %v1128 = vadd.s32 %v992, %v1086
        %v1129 = vadd.s32 %v993, %v1087
        %v1130 = vadd.s32 %v994, %v1088
        %v1131 = vadd.s32 %v995, %v1089
        %v1132 = vadd.s32 %v996, %v1090
        %v1133 = vcvt.s32.f32 %v1091
        %v1134 = vcvt.s32.f32 %v1092
        %v1135 = vcvt.s32.f32 %v1093
        %v1136 = vcvt.s32.f32 %v1094
        %v1137 = vcvt.s32.f32 %v1095
        %v1138 = vcvt.s32.f32 %v1096
        %v1139 = vcvt.s32.f32 %v1097
        %v1140 = vcvt.s32.f32 %v1098
        %v1141 = vcvt.s32.f32 %v1099
        %v1142 = vcvt.s32.f32 %v1100
        %v1143 = vcvt.s32.f32 %v1101
        %v1144 = vcvt.s32.f32 %v1102
        %v1145 = vcvt.s32.f32 %v1103
        %v1146 = vcvt.s32.f32 %v1104
        %v1147 = vcvt.s32.f32 %v1105
        %v1148 = vcvt.s32.f32 %v1106
        %v1149 = vcvt.s32.f32 %v1107
        %v1150 = vcvt.s32.f32 %v1108
        %v1151 = vcvt.s32.f32 %v1109
        %v1152 = vcvt.s32.f32 %v1110
        %v1153 = vcvt.s32.f32 %v1111
        %v1154 = vcvt.s32.f32 %v1112
        %v1155 = vcvt.s32.f32 %v1113
        %v1156 = vcvt.s32.f32 %v1114
        %v1157 = vcvt.s32.f32 %v1115
        %v1158 = vcvt.s32.f32 %v1116
        %v1159 = vcvt.s32.f32 %v1117
        %v1160 = vcvt.s32.f32 %v1118
        %v1161 = vcvt.s32.f32 %v1119
        %v1162 = vcvt.s32.f32 %v1120
        %v1163 = vcvt.s32.f32 %v1121
        %v1164 = vcvt.s32.f32 %v1122
        %v1165 = vcvt.s32.f32 %v1123
        %v1166 = vcvt.s32.f32 %v1124
        %v1167 = vcvt.s32.f32 %v1125
        %v1168 = vcvt.s32.f32 %v1126
        %v1169 = vcvt.s32.f32 %v1127
        %v1170 = vcvt.s32.f32 %v1128
        %v1171 = vcvt.s32.f32 %v1129
        %v1172 = vcvt.s32.f32 %v1130
        %v1173 = vcvt.s32.f32 %v1131
        %v1174 = vcvt.s32.f32 %v1132
        %v1175 = vld [vmem:[#allocation2] sm:$0xff]
        %v1176 = vld [vmem:[#allocation2 + $0x8] sm:$0xff]
        %v1177 = vld [vmem:[%s2] sm:$0xff]
        %1179 = vset.pattern.permute.xlu0 0
        %1180 = vperm.xlu0 %1179, %v1177
        %v1181 = vpop.permute.xlu0 %1180
        %vm1183 = vcmask 277504
        %v1185 = vsel %vm1183, %v1176, 0
        %vm1187 = vcmask 1041408
        %v1189 = vsel %vm1187, %v1173, 0
        %v1192 = vsel %vm1187, %v1174, 0
        %1194 = vmatprep.subr.mxu0 %v1134
        %1195 = vmatpush1.msra.mxu0 %v1133
        %1196 = vmatprep.subr.mxu0 %v1136
        %1197 = vmatpush1.msra.mxu0 %v1135
        %1198 = vmatprep.subr.mxu0 %v1138
        %1199 = vmatpush1.msra.mxu0 %v1137
        %1200 = vmatprep.subr.mxu0 %v1140
        %1201 = vmatpush1.msra.mxu0 %v1139
        %1202 = vmatprep.subr.mxu0 %v1142
        %1203 = vmatpush1.msra.mxu0 %v1141
        %1204 = vmatprep.subr.mxu0 %v1144
        %1205 = vmatpush1.msra.mxu0 %v1143
        %1206 = vmatprep.subr.mxu0 %v1146
        %1207 = vmatpush1.msra.mxu0 %v1145
        %1208 = vmatprep.subr.mxu0 %v1148
        %1209 = vmatpush1.msra.mxu0 %v1147
        %1210 = vmatprep.subr.mxu0 %v1150
        %1211 = vmatpush1.msra.mxu0 %v1149
        %1212 = vmatprep.subr.mxu0 %v1152
        %1213 = vmatpush1.msra.mxu0 %v1151
        %1214 = vmatprep.subr.mxu0 %v1154
        %1215 = vmatpush1.msra.mxu0 %v1153
        %1216 = vmatprep.subr.mxu0 %v1156
        %1217 = vmatpush1.msra.mxu0 %v1155
        %1218 = vmatprep.subr.mxu0 %v1158
        %1219 = vmatpush1.msra.mxu0 %v1157
        %1220 = vmatprep.subr.mxu0 %v1160
        %1221 = vmatpush1.msra.mxu0 %v1159
        %1222 = vmatprep.subr.mxu0 %v1162
        %1223 = vmatpush1.msra.mxu0 %v1161
        %1224 = vmatprep.subr.mxu0 %v1164
        %1225 = vmatpush1.msra.mxu0 %v1163
        %1226 = vmatprep.subr.mxu0 %v1166
        %1227 = vmatpush1.msra.mxu0 %v1165
        %1228 = vmatprep.subr.mxu0 %v1168
        %1229 = vmatpush1.msra.mxu0 %v1167
        %1230 = vmatprep.subr.mxu0 %v1170
        %1231 = vmatpush1.msra.mxu0 %v1169
        %1232 = vmatprep.subr.mxu0 %v1172
        %1233 = vmatpush1.msra.mxu0 %v1171
        %1234 = vmatprep.subr.mxu0 %v1192
        %1235 = vmatpush1.msra.mxu0 %v1189
        %1236 = vmatprep.subr.mxu0 0.0
        %1237 = vmatpush1.msra.mxu0 0.0
        %1238 = vmatprep.subr.mxu0 0.0
        %1239 = vmatpush1.msra.mxu0 0.0
        %1240 = vmatprep.subr.mxu0 0.0
        %1241 = vmatpush1.msra.mxu0 0.0
        %1242 = vmatprep.subr.mxu0 0.0
        %1243 = vmatpush1.msra.mxu0 0.0
        %1244 = vmatprep.subr.mxu0 0.0
        %1245 = vmatpush1.msra.mxu0 0.0
        %1246 = vmatprep.subr.mxu0 0.0
        %1247 = vmatpush1.msra.mxu0 0.0
        %1248 = vmatprep.subr.mxu0 0.0
        %1249 = vmatpush1.msra.mxu0 0.0
        %1250 = vmatprep.subr.mxu0 0.0
        %1251 = vmatpush1.msra.mxu0 0.0
        %1252 = vmatprep.subr.mxu0 0.0
        %1253 = vmatpush1.msra.mxu0 0.0
        %1254 = vmatprep.subr.mxu0 0.0
        %1255 = vmatpush1.msra.mxu0 0.0
        %1256 = vmatprep.subr.mxu0 0.0
        %1257 = vmatpush1.msra.mxu0 0.0
        %1258 = vmatprep.mubr.f32.mxu0 %v1185
        %1259 = vmatmul.mubr.f32.gmra.mrb[0].mxu0 %v1175
        %v1260 = vpop.f32.mrb[0].mxu0
        %v1261 = vadd.f32 %v1181, %v1260
        %v1262 = vpop.f32.mrb[0].mxu0
        %v1263 = vadd.f32 %v1181, %v1262
        %1264 = vdwg.mxu0
        %1265 = vst [vmem:[%s199] sm:$0xff] %v1261
        %1266 = vst [vmem:[%s199 + $0x8] sm:$0xff] %v1263
        %s1267 = sand.u32 %s97, 1
        %s1268 = scalar_lea.sflag [#allocation4], %s1267
        %s1269 = sand.u32 %s97, 1
        %s1270 = smul.addr %s1269, 16
        %s1271 = scalar_lea.vmem [#allocation7], %s1270
        // Predicated region
        $region41: #{tpu_custom_call.1} parent=31 // pred_check
          %p1272 = pneg %p107
        $region42: #{tpu_custom_call.1} parent=31 // pred_check_branch
          %1274 = sbr.rel (%p1272) target = $region44
        $region43: #{tpu_custom_call.1} parent=31 // pred_region
          %s1275 = smul.u32 2, %s21
          %s1277 = ssub.s32 256, 256
          %1278 = vsyncadd %s1268, %s1277
          %s1279 = smul.addr %s1275, 128
          %s1280 = scalar_lea.hbm %s3, %s1279
          %s1282 = sshll.u32 %s1271, 4
          %s1283 = int_to_ptr.vmem [resolvable:$true] %s1282
          %1285 = dma.vmem_to_hbm [thread:$0]  %s1283, 256, %s1280, %s1268
        $region44: #{tpu_custom_call.1} parent=31 // pred_fallthru
          _
      $region32: #{tpu_custom_call.1} parent=5 // pred_fallthru
        _
      %p1286 = scmp.le.s32.totalorder 2, %s16
      // Predicated region
      $region45: #{tpu_custom_call.1} parent=5 // pred_check
        %p1287 = pneg %p1286
      $region46: #{tpu_custom_call.1} parent=5 // pred_check_branch
        %1289 = sbr.rel (%p1287) target = $region48
      $region47: #{tpu_custom_call.1} parent=5 // pred_region
        %s1290 = ssub.s32 %s16, 2
        // Predicated region
        $region49: #{tpu_custom_call.1} parent=47 // pred_check
          %p1291 = pneg %p113
        $region50: #{tpu_custom_call.1} parent=47 // pred_check_branch
          %1293 = sbr.rel (%p1291) target = $region52
        $region51: #{tpu_custom_call.1} parent=47 // pred_region
          %s1294 = sand.u32 %s98, 1
          %s1295 = scalar_lea.sflag [#allocation4], %s1294
          %s1296 = sand.u32 %s98, 1
          %s1297 = smul.addr %s1296, 16
          %s1298 = scalar_lea.vmem [#allocation7], %s1297
          %1299 = dma.done %s1295, 256
        $region52: #{tpu_custom_call.1} parent=47 // pred_fallthru
          _
      $region48: #{tpu_custom_call.1} parent=5 // pred_fallthru
        _
    $region6: #{tpu_custom_call.1} parent=1 // loop_footer
      %s20 = sadd.s32 1, %s16
    $region7: #{tpu_custom_call.1} parent=1 // loop_footer_branch
      %15 = sbr.rel target = $region3
    $region8: #{tpu_custom_call.1} parent=1 // loop_exit
      _
    %1300 = vsyncpa [#allocation3], 1
    %s1301 = scalar_lea.sflag [#allocation3], 1
    %1302 = vsyncpa %s1301, 1
    %1303 = vsyncpa [#allocation6], 1
    %s1304 = scalar_lea.sflag [#allocation6], 1
    %1305 = vsyncpa %s1304, 1
    %1306 = vsyncpa [#allocation4], 1
    %s1307 = scalar_lea.sflag [#allocation4], 1
    %1308 = vsyncpa %s1307, 1

</llo_original>
